<compile_context>
chip_gen: v7x
topology: tpu7x:2x2x1
jax: 0.10.0
libtpu: 0.0.40
codegen_flags: <defaults>
</compile_context>

<pallas_src>
import functools

import jax
import jax.numpy as jnp
from jax.experimental import pallas as pl
from jax.experimental.pallas import tpu as pltpu


def _round_up(x, m):
    return (x + m - 1) // m * m


def _pick_tile(n_pad, cap):
    """Largest power-of-two multiple of 128 that divides n_pad, capped."""
    t = 128
    while t * 2 <= cap and n_pad % (t * 2) == 0:
        t *= 2
    return t


def _sage_layer_kernel(adj_ref, xnb_ref, xself_ref, wl_ref, wr_ref, shift_ref,
                       out_ref, acc_ref, hself_ref, *,
                       activation, deg_col, ones_col):
    """One fused SAGE layer, tiled over (row tile i, reduction tile k).

    acc_ref accumulates A @ x over k (degree rides along in lane `deg_col`
    because that input lane holds 1.0).  hself_ref holds x_self @ W_r,
    computed once at k==0 so it overlaps the adjacency DMA stream.  At the
    last k step: mean-normalize, agg @ W_l, add the hoisted self term and the
    folded bias/BN shift, apply the activation.
    """
    k = pl.program_id(1)

    @pl.when(k == 0)
    def _():
        acc_ref[...] = jnp.zeros_like(acc_ref)
        # self-projection hoisted off the last-k critical path
        hself_ref[...] = jnp.dot(xself_ref[...], wr_ref[...],
                                 preferred_element_type=jnp.float32)

    adj = adj_ref[...].astype(jnp.bfloat16)          # int8 0/1 -> exact bf16
    acc_ref[...] += jnp.dot(adj, xnb_ref[...],
                            preferred_element_type=jnp.float32)

    @pl.when(k == pl.num_programs(1) - 1)
    def _():
        acc = acc_ref[...]
        deg = acc[:, deg_col:deg_col + 1]            # degree via MXU ones-column
        inv = jnp.where(deg > 0.0, pl.reciprocal(deg, approx=True), 0.0)
        agg = (acc * inv).astype(jnp.bfloat16)       # 0 for isolated nodes
        h = hself_ref[...] + jnp.dot(agg, wl_ref[...],
                                     preferred_element_type=jnp.float32)
        h = h + shift_ref[...]                       # bias + BN shift folded
        if activation == "relu":
            h = jnp.maximum(h, 0.0)
        else:
            h = jax.nn.sigmoid(h)
        if ones_col is not None:
            # plant the next layer's degree "ones column" in a spare lane
            col = jax.lax.broadcasted_iota(jnp.int32, h.shape, 1)
            h = jnp.where(col == ones_col, 1.0, h)
        out_ref[...] = h.astype(out_ref.dtype)


def sage_layer(adj_p, x_p, wl, wr, shift, *, n_pad, tm, tk, c_in_pad,
               c_out_pad, activation, deg_col, ones_col, out_dtype):
    grid = (n_pad // tm, n_pad // tk)
    kernel = functools.partial(_sage_layer_kernel, activation=activation,
                               deg_col=deg_col, ones_col=ones_col)
    return pl.pallas_call(
        kernel,
        out_shape=jax.ShapeDtypeStruct((n_pad, c_out_pad), out_dtype),
        grid_spec=pltpu.PrefetchScalarGridSpec(
            num_scalar_prefetch=0,
            grid=grid,
            in_specs=[
                pl.BlockSpec((tm, tk), lambda i, k: (i, k)),           # adj tile (int8)
                pl.BlockSpec((tk, c_in_pad), lambda i, k: (k, 0)),     # x (neighbor rows)
                pl.BlockSpec((tm, c_in_pad), lambda i, k: (i, 0)),     # x (self rows)
                pl.BlockSpec((c_in_pad, c_out_pad), lambda i, k: (0, 0)),  # W_l (BN folded)
                pl.BlockSpec((c_in_pad, c_out_pad), lambda i, k: (0, 0)),  # W_r (BN folded)
                pl.BlockSpec((1, c_out_pad), lambda i, k: (0, 0)),     # fused shift
            ],
            out_specs=pl.BlockSpec((tm, c_out_pad), lambda i, k: (i, 0)),
            scratch_shapes=[
                pltpu.VMEM((tm, c_in_pad), jnp.float32),    # A@x accumulator
                pltpu.VMEM((tm, c_out_pad), jnp.float32),   # hoisted x_self @ W_r
            ],
        ),
        compiler_params=pltpu.CompilerParams(
            dimension_semantics=("parallel", "arbitrary"),
        ),
    )(adj_p, x_p, x_p, wl, wr, shift)


class SAGEPallas:
    """Deterministically-initialized SAGE model (inference forward)."""

    def __init__(self, in_channels, hidden_channels, num_layers, dropout,
                 key=jax.random.PRNGKey(0)):
        self.dropout = dropout  # identity in inference mode
        dims_in = [in_channels] + [hidden_channels] * (num_layers - 1)
        dims_out = [hidden_channels] * (num_layers - 1) + [1]
        eps = 1e-5
        self.raw = []    # unfused f32 params for the pure-JAX reference
        self.layers = []
        for li, (ci, co) in enumerate(zip(dims_in, dims_out)):
            key, k1, k2, k3 = jax.random.split(key, 4)
            s = 1.0 / jnp.sqrt(jnp.float32(ci))
            w_l = jax.random.uniform(k1, (ci, co), jnp.float32, -s, s)
            w_r = jax.random.uniform(k2, (ci, co), jnp.float32, -s, s)
            b = jax.random.uniform(k3, (1, co), jnp.float32, -s, s)
            self.raw.append((w_l, w_r, b))

            last = li == num_layers - 1
            if not last:
                # BatchNorm1d at init (inference): gamma=1, beta=0, mean=0, var=1
                bn_scale = jnp.ones((1, co), jnp.float32) / jnp.sqrt(1.0 + eps)
                bn_shift = jnp.zeros((1, co), jnp.float32)
            else:
                bn_scale = jnp.ones((1, co), jnp.float32)
                bn_shift = jnp.zeros((1, co), jnp.float32)

            # +1 guarantees a spare lane for the in-kernel degree ones-column
            ci_pad = _round_up(ci + 1, 128)
            co_pad = _round_up(co, 128) if last else _round_up(co + 1, 128)
            wl = jnp.zeros((ci_pad, co_pad), jnp.float32)
            wl = wl.at[:ci, :co].set(w_l * bn_scale)
            wr = jnp.zeros((ci_pad, co_pad), jnp.float32)
            wr = wr.at[:ci, :co].set(w_r * bn_scale)
            shift = jnp.zeros((1, co_pad), jnp.float32)
            shift = shift.at[:, :co].set(b * bn_scale + bn_shift)
            self.layers.append(dict(
                wl=wl.astype(jnp.bfloat16), wr=wr.astype(jnp.bfloat16),
                shift=shift, ci_pad=ci_pad, co_pad=co_pad,
                deg_col=ci,                      # first padding lane of the input
                ones_col=None if last else co,   # plant ones for the next layer
                act="sigmoid" if last else "relu"))

    def __call__(self, x, adj):
        n, ci0 = x.shape
        n_pad = _round_up(n, 128)                 # pad only to lane/sublane grain
        tm = _pick_tile(n_pad, 512)               # row tile
        tk = _pick_tile(n_pad, 2048)              # reduction tile (adj-stream bound)
        if n_pad // tm == 1 and n_pad >= 256:     # give v7x's 2nd TensorCore work
            tm //= 2
        ci0_pad = self.layers[0]["ci_pad"]

        # adjacency stored as int8 in HBM (0/1 exact); widened in-kernel
        adj_p = jnp.zeros((n_pad, n_pad), jnp.int8)
        adj_p = adj_p.at[:n, :n].set(adj.astype(jnp.int8))
        x_p = jnp.zeros((n_pad, ci0_pad), jnp.bfloat16)
        x_p = x_p.at[:n, :ci0].set(x.astype(jnp.bfloat16))
        x_p = x_p.at[:, ci0].set(jnp.bfloat16(1.0))   # degree ones-column

        n_layers = len(self.layers)
        for li, lay in enumerate(self.layers):
            out_dtype = jnp.float32 if li == n_layers - 1 else jnp.bfloat16
            x_p = sage_layer(adj_p, x_p, lay["wl"], lay["wr"], lay["shift"],
                             n_pad=n_pad, tm=tm, tk=tk,
                             c_in_pad=lay["ci_pad"], c_out_pad=lay["co_pad"],
                             activation=lay["act"], deg_col=lay["deg_col"],
                             ones_col=lay["ones_col"], out_dtype=out_dtype)
            # F.dropout(training=False) -> identity
        return x_p[:n, :1]


def sage_reference(x, adj, raw_params):
    """Pure-JAX f32 reference with identical eval-mode semantics."""
    eps = 1e-5
    deg = jnp.sum(adj, axis=1, keepdims=True)
    deg_inv = jnp.where(deg > 0, 1.0 / deg, 0.0)
    n_layers = len(raw_params)
    h = x
    for li, (w_l, w_r, b) in enumerate(raw_params):
        agg = (adj @ h) * deg_inv
        h = agg @ w_l + h @ w_r + b
        if li < n_layers - 1:
            h = h / jnp.sqrt(1.0 + eps)   # BN inference at default init
            h = jnp.maximum(h, 0.0)
        else:
            h = jax.nn.sigmoid(h)
    return h


if __name__ == "__main__":
    key = jax.random.PRNGKey(0)
    k_x, k_adj, k_params = jax.random.split(key, 3)

    num_nodes = 16
    in_channels = 8
    hidden_channels = 32
    num_layers = 3
    dropout = 0.5

    # node features [N, C]
    x = jax.random.normal(k_x, (num_nodes, in_channels), jnp.float32)
    # dense symmetric adjacency (no self loops), adj[i, j] = 1 if edge j->i
    a = jax.random.bernoulli(k_adj, 0.3, (num_nodes, num_nodes))
    a = jnp.logical_or(a, a.T)
    a = a & ~jnp.eye(num_nodes, dtype=bool)
    adj = a.astype(jnp.float32)

    model = SAGEPallas(in_channels, hidden_channels, num_layers, dropout,
                       key=k_params)
    out = jax.block_until_ready(model(x, adj))
    ref = sage_reference(x, adj, model.raw)

    assert out.shape == (num_nodes, 1)
    assert bool(jnp.all(jnp.isfinite(out)))
    assert bool(jnp.all((out >= 0.0) & (out <= 1.0)))
    max_err = float(jnp.max(jnp.abs(out - ref)))
    assert max_err < 5e-2, f"max |pallas - ref| = {max_err}"
    print("KERNEL_OK")
</pallas_src>

<mosaic_0001>
module attributes {stable_mosaic.version = 11 : i64} {
  func.func @_sage_layer_kernel(%arg0: i32, %arg1: i32, %arg2: memref<128x128xi8, #tpu.memory_space<vmem>>, %arg3: memref<128x128xbf16, #tpu.memory_space<vmem>>, %arg4: memref<128x128xbf16, #tpu.memory_space<vmem>>, %arg5: memref<128x128xbf16, #tpu.memory_space<vmem>>, %arg6: memref<128x128xbf16, #tpu.memory_space<vmem>>, %arg7: memref<1x128xf32, #tpu.memory_space<vmem>>, %arg8: memref<128x128xbf16, #tpu.memory_space<vmem>>, %arg9: memref<128x128xf32, #tpu.memory_space<vmem>>, %arg10: memref<128x128xf32, #tpu.memory_space<vmem>>) attributes {dimension_semantics = [#tpu.dimension_semantics<parallel>, #tpu.dimension_semantics<arbitrary>], iteration_bounds = array<i64: 1, 1>, scalar_prefetch = 0 : i64, scratch_operands = 2 : i64, tpu.core_type = #tpu.core_type<tc>, window_params = [{transform_indices = @transform_0, window_bounds = array<i64: 128, 128>}, {transform_indices = @transform_1, window_bounds = array<i64: 128, 128>}, {transform_indices = @transform_2, window_bounds = array<i64: 128, 128>}, {pipeline_mode = #tpu.pipeline_mode<synchronous>, transform_indices = @transform_3, window_bounds = array<i64: 128, 128>}, {pipeline_mode = #tpu.pipeline_mode<synchronous>, transform_indices = @transform_4, window_bounds = array<i64: 128, 128>}, {pipeline_mode = #tpu.pipeline_mode<synchronous>, transform_indices = @transform_5, window_bounds = array<i64: 1, 128>}, {transform_indices = @transform_6, window_bounds = array<i64: 128, 128>}]} {
    %c0_i32 = arith.constant 0 : i32
    %0 = arith.cmpi eq, %arg1, %c0_i32 : i32
    %1 = arith.extui %0 : i1 to i32
    %c0_i32_0 = arith.constant 0 : i32
    %2 = arith.cmpi ne, %1, %c0_i32_0 : i32
    scf.if %2 {
      %cst_10 = arith.constant 0.000000e+00 : f32
      %13 = vector.broadcast %cst_10 : f32 to vector<128x128xf32>
      %c0_11 = arith.constant 0 : index
      %c0_12 = arith.constant 0 : index
      %14 = vector.load %arg9[%c0_11, %c0_12] : memref<128x128xf32, #tpu.memory_space<vmem>>, vector<128x128xf32>
      tpu.vector_store %arg9[%c0_11, %c0_12], %13 {strides = array<i32>} : memref<128x128xf32, #tpu.memory_space<vmem>>, vector<128x128xf32>,
      %c0_13 = arith.constant 0 : index
      %c0_14 = arith.constant 0 : index
      %15 = vector.load %arg4[%c0_13, %c0_14] : memref<128x128xbf16, #tpu.memory_space<vmem>>, vector<128x128xbf16>
      %c0_15 = arith.constant 0 : index
      %c0_16 = arith.constant 0 : index
      %16 = vector.load %arg6[%c0_15, %c0_16] : memref<128x128xbf16, #tpu.memory_space<vmem>>, vector<128x128xbf16>
      %cst_17 = arith.constant dense<0.000000e+00> : vector<128x128xf32>
      %17 = tpu.matmul %15, %16, %cst_17 {dimension_numbers = #tpu.dot_dimension_numbers<[1], [0], [0], [1], [0, 0, 1, 1], [], []>} : vector<128x128xbf16>, vector<128x128xbf16>, vector<128x128xf32> -> vector<128x128xf32>
      %c0_18 = arith.constant 0 : index
      %c0_19 = arith.constant 0 : index
      %18 = vector.load %arg10[%c0_18, %c0_19] : memref<128x128xf32, #tpu.memory_space<vmem>>, vector<128x128xf32>
      tpu.vector_store %arg10[%c0_18, %c0_19], %17 {strides = array<i32>} : memref<128x128xf32, #tpu.memory_space<vmem>>, vector<128x128xf32>,
    } else {
    }
    %c0 = arith.constant 0 : index
    %c0_1 = arith.constant 0 : index
    %3 = vector.load %arg2[%c0, %c0_1] : memref<128x128xi8, #tpu.memory_space<vmem>>, vector<128x128xi8>
    %4 = arith.sitofp %3 : vector<128x128xi8> to vector<128x128xbf16>
    %c0_2 = arith.constant 0 : index
    %c0_3 = arith.constant 0 : index
    %5 = vector.load %arg9[%c0_2, %c0_3] : memref<128x128xf32, #tpu.memory_space<vmem>>, vector<128x128xf32>
    %c0_4 = arith.constant 0 : index
    %c0_5 = arith.constant 0 : index
    %6 = vector.load %arg3[%c0_4, %c0_5] : memref<128x128xbf16, #tpu.memory_space<vmem>>, vector<128x128xbf16>
    %cst = arith.constant dense<0.000000e+00> : vector<128x128xf32>
    %7 = tpu.matmul %4, %6, %cst {dimension_numbers = #tpu.dot_dimension_numbers<[1], [0], [0], [1], [0, 0, 1, 1], [], []>} : vector<128x128xbf16>, vector<128x128xbf16>, vector<128x128xf32> -> vector<128x128xf32>
    %8 = arith.addf %5, %7 : vector<128x128xf32>
    %c0_6 = arith.constant 0 : index
    %c0_7 = arith.constant 0 : index
    %9 = vector.load %arg9[%c0_6, %c0_7] : memref<128x128xf32, #tpu.memory_space<vmem>>, vector<128x128xf32>
    tpu.vector_store %arg9[%c0_6, %c0_7], %8 {strides = array<i32>} : memref<128x128xf32, #tpu.memory_space<vmem>>, vector<128x128xf32>,
    %c0_i32_8 = arith.constant 0 : i32
    %10 = arith.cmpi eq, %arg1, %c0_i32_8 : i32
    %11 = arith.extui %10 : i1 to i32
    %c0_i32_9 = arith.constant 0 : i32
    %12 = arith.cmpi ne, %11, %c0_i32_9 : i32
    scf.if %12 {
      %c0_10 = arith.constant 0 : index
      %c0_11 = arith.constant 0 : index
      %13 = vector.load %arg9[%c0_10, %c0_11] : memref<128x128xf32, #tpu.memory_space<vmem>>, vector<128x128xf32>
      %14 = vector.extract_strided_slice %13 {offsets = [0, 8], sizes = [128, 1], strides = [1, 1]} : vector<128x128xf32> to vector<128x1xf32>
      %cst_12 = arith.constant 0.000000e+00 : f32
      %15 = vector.broadcast %cst_12 : f32 to vector<128x1xf32>
      %16 = arith.cmpf ogt, %14, %15 : vector<128x1xf32>
      %17 = tpu.reciprocal %14 {approx = true} : vector<128x1xf32> -> vector<128x1xf32>
      %cst_13 = arith.constant 0.000000e+00 : f32
      %18 = vector.broadcast %cst_13 : f32 to vector<128x1xf32>
      %19 = arith.select %16, %17, %18 : vector<128x1xi1>, vector<128x1xf32>
      %20 = vector.broadcast %19 : vector<128x1xf32> to vector<128x128xf32>
      %21 = arith.mulf %13, %20 : vector<128x128xf32>
      %22 = arith.truncf %21 : vector<128x128xf32> to vector<128x128xbf16>
      %c0_14 = arith.constant 0 : index
      %c0_15 = arith.constant 0 : index
      %23 = vector.load %arg10[%c0_14, %c0_15] : memref<128x128xf32, #tpu.memory_space<vmem>>, vector<128x128xf32>
      %c0_16 = arith.constant 0 : index
      %c0_17 = arith.constant 0 : index
      %24 = vector.load %arg5[%c0_16, %c0_17] : memref<128x128xbf16, #tpu.memory_space<vmem>>, vector<128x128xbf16>
      %cst_18 = arith.constant dense<0.000000e+00> : vector<128x128xf32>
      %25 = tpu.matmul %22, %24, %cst_18 {dimension_numbers = #tpu.dot_dimension_numbers<[1], [0], [0], [1], [0, 0, 1, 1], [], []>} : vector<128x128xbf16>, vector<128x128xbf16>, vector<128x128xf32> -> vector<128x128xf32>
      %26 = arith.addf %23, %25 : vector<128x128xf32>
      %c0_19 = arith.constant 0 : index
      %c0_20 = arith.constant 0 : index
      %27 = vector.load %arg7[%c0_19, %c0_20] : memref<1x128xf32, #tpu.memory_space<vmem>>, vector<1x128xf32>
      %28 = vector.broadcast %27 : vector<1x128xf32> to vector<128x128xf32>
      %29 = arith.addf %26, %28 : vector<128x128xf32>
      %cst_21 = arith.constant 0.000000e+00 : f32
      %30 = vector.broadcast %cst_21 : f32 to vector<128x128xf32>
      %31 = arith.maximumf %29, %30 : vector<128x128xf32>
      %32 = tpu.iota {dimensions = array<i32: 1>} : vector<128x128xi32>
      %c32_i32 = arith.constant 32 : i32
      %33 = vector.broadcast %c32_i32 : i32 to vector<128x128xi32>
      %34 = arith.cmpi eq, %32, %33 : vector<128x128xi32>
      %cst_22 = arith.constant 1.000000e+00 : f32
      %35 = vector.broadcast %cst_22 : f32 to vector<128x128xf32>
      %36 = arith.select %34, %35, %31 : vector<128x128xi1>, vector<128x128xf32>
      %37 = arith.truncf %36 : vector<128x128xf32> to vector<128x128xbf16>
      %c0_23 = arith.constant 0 : index
      %c0_24 = arith.constant 0 : index
      %38 = vector.load %arg8[%c0_23, %c0_24] : memref<128x128xbf16, #tpu.memory_space<vmem>>, vector<128x128xbf16>
      tpu.vector_store %arg8[%c0_23, %c0_24], %37 {strides = array<i32>} : memref<128x128xbf16, #tpu.memory_space<vmem>>, vector<128x128xbf16>,
    } else {
    }
    return
  }
  func.func @transform_0(%arg0: i32, %arg1: i32) -> (i32, i32) {
    %c0_i32 = arith.constant 0 : i32
    return %arg0, %arg1 : i32, i32
  }
  func.func @transform_1(%arg0: i32, %arg1: i32) -> (i32, i32) {
    %c0_i32 = arith.constant 0 : i32
    %c0_i32_0 = arith.constant 0 : i32
    return %arg1, %c0_i32 : i32, i32
  }
  func.func @transform_2(%arg0: i32, %arg1: i32) -> (i32, i32) {
    %c0_i32 = arith.constant 0 : i32
    %c0_i32_0 = arith.constant 0 : i32
    return %arg0, %c0_i32 : i32, i32
  }
  func.func @transform_3(%arg0: i32, %arg1: i32) -> (i32, i32) {
    %c0_i32 = arith.constant 0 : i32
    %c0_i32_0 = arith.constant 0 : i32
    %c0_i32_1 = arith.constant 0 : i32
    return %c0_i32, %c0_i32_0 : i32, i32
  }
  func.func @transform_4(%arg0: i32, %arg1: i32) -> (i32, i32) {
    %c0_i32 = arith.constant 0 : i32
    %c0_i32_0 = arith.constant 0 : i32
    %c0_i32_1 = arith.constant 0 : i32
    return %c0_i32, %c0_i32_0 : i32, i32
  }
  func.func @transform_5(%arg0: i32, %arg1: i32) -> (i32, i32) {
    %c0_i32 = arith.constant 0 : i32
    %c0_i32_0 = arith.constant 0 : i32
    %c0_i32_1 = arith.constant 0 : i32
    return %c0_i32, %c0_i32_0 : i32, i32
  }
  func.func @transform_6(%arg0: i32, %arg1: i32) -> (i32, i32) {
    %c0_i32 = arith.constant 0 : i32
    %c0_i32_0 = arith.constant 0 : i32
    return %arg0, %c0_i32 : i32, i32
  }
}

</mosaic_0001>

<llo_original>
// kernel: tpu_custom_call.1
$region0: #{tpu_custom_call.1}
  #allocation0 [shape = 'u32[]', space=smem, size = 0x4, offset = 0x4, fixed_abs, tag = 'smem constant byte address 0x4 - core index']
  #allocation1 [shape = 'u32[144,128]{1,0:T(1,128)}', space=vmem, size = 0x12000, scoped, tag = 'internal scratch']
  #allocation2 [shape = 'f32[128,128]{1,0:T(8,128)}', space=vmem, size = 0x10000, scoped, tag = 'scratch operand']
  #allocation3 [shape = 'f32[128,128]{1,0:T(8,128)}', space=vmem, size = 0x10000, scoped, tag = 'scratch operand']
  %s0 = inlined_call_operand.hbm [shape: s8[128,128], index: 0, kind: input, shape index: {}]
  %s1 = inlined_call_operand.hbm [shape: bf16[128,128], index: 1, kind: input, shape index: {}]
  %s2 = inlined_call_operand.hbm [shape: bf16[128,128], index: 2, kind: input, shape index: {}]
  %s3 = inlined_call_operand.hbm [shape: bf16[128,128], index: 3, kind: input, shape index: {}]
  %s4 = inlined_call_operand.hbm [shape: bf16[128,128], index: 4, kind: input, shape index: {}]
  %s5 = inlined_call_operand.vmem [shape: f32[1,128], index: 5, kind: input, shape index: {}]
  %s6 = inlined_call_operand.hbm [shape: bf16[128,128], index: 6, kind: output, shape index: {}]
  %s7 = sld [smem:[#allocation0]]
  $region62: #{tpu_custom_call.1} parent=0
    _
  %s9 = ssub.s32 1, %s7
  %s10 = scalar_select 0, %s9, %s7
  $region1: #{tpu_custom_call.1} parent=0
    #allocation4 [shape = 'u8[16384]{0}', space=vmem, size = 0x4000, scoped, tag = 'input window, operand 0, single buffered']
    #allocation5 [shape = 's32[1]{0}', space=sflag, size = 0x4, scoped, tag = 'scoped memory for tpu_custom_call.1']
    #allocation6 [shape = 's32[1]{0}', space=sflag, size = 0x4, scoped, tag = 'scoped memory for tpu_custom_call.1']
    #allocation7 [shape = 'u8[32768]{0}', space=vmem, size = 0x8000, scoped, tag = 'input window, operand 1, single buffered']
    #allocation8 [shape = 's32[1]{0}', space=sflag, size = 0x4, scoped, tag = 'scoped memory for tpu_custom_call.1']
    #allocation9 [shape = 'u8[32768]{0}', space=vmem, size = 0x8000, scoped, tag = 'input window, operand 2, single buffered']
    #allocation10 [shape = 'u8[32768]{0}', space=vmem, size = 0x8000, scoped, tag = 'input window, operand 3, single buffered']
    #allocation11 [shape = 's32[1]{0}', space=sflag, size = 0x4, scoped, tag = 'scoped memory for tpu_custom_call.1']
    #allocation12 [shape = 'u8[32768]{0}', space=vmem, size = 0x8000, scoped, tag = 'input window, operand 4, single buffered']
    #allocation13 [shape = 'u8[32768]{0}', space=vmem, size = 0x8000, scoped, tag = 'output window, operand 0, single buffered']
    %11 = vsyncpa [#allocation5], 0
    %12 = vsyncpa [#allocation8], 0
    %13 = vsyncpa [#allocation11], 0
    %14 = vsyncpa [#allocation6], 0
    // Predicated region
    $region2: #{tpu_custom_call.1} parent=1 // pred_check
      _
    $region3: #{tpu_custom_call.1} parent=1 // pred_check_branch
      %16 = sbr.rel (0) target = $region5
    $region4: #{tpu_custom_call.1} parent=1 // pred_region
      %s18 = ssub.s32 512, 512
      %19 = vsyncadd [#allocation5], %s18
      %s20 = sshll.u32 [#allocation4], 4
      %s21 = int_to_ptr.vmem [resolvable:$true] %s20
      %26 = dma.hbm_to_vmem [thread:$0]  %s0, 512, %s21, [#allocation5], 128, 128, 8
    $region5: #{tpu_custom_call.1} parent=1 // pred_fallthru
      _
    // Predicated region
    $region6: #{tpu_custom_call.1} parent=1 // pred_check
      _
    $region7: #{tpu_custom_call.1} parent=1 // pred_check_branch
      %28 = sbr.rel (0) target = $region9
    $region8: #{tpu_custom_call.1} parent=1 // pred_region
      %s30 = ssub.s32 1024, 1024
      %31 = vsyncadd [#allocation8], %s30
      %s32 = sshll.u32 [#allocation7], 4
      %s33 = int_to_ptr.vmem [resolvable:$true] %s32
      %38 = dma.hbm_to_vmem [thread:$0]  %s1, 1024, %s33, [#allocation8], 64, 64, 4
    $region9: #{tpu_custom_call.1} parent=1 // pred_fallthru
      _
    // Predicated region
    $region10: #{tpu_custom_call.1} parent=1 // pred_check
      _
    $region11: #{tpu_custom_call.1} parent=1 // pred_check_branch
      %40 = sbr.rel (0) target = $region13
    $region12: #{tpu_custom_call.1} parent=1 // pred_region
      %s42 = ssub.s32 1024, 1024
      %43 = vsyncadd [#allocation8], %s42
      %s44 = sshll.u32 [#allocation9], 4
      %s45 = int_to_ptr.vmem [resolvable:$true] %s44
      %50 = dma.hbm_to_vmem [thread:$0]  %s2, 1024, %s45, [#allocation8], 64, 64, 4
    $region13: #{tpu_custom_call.1} parent=1 // pred_fallthru
      _
    // Predicated region
    $region14: #{tpu_custom_call.1} parent=1 // pred_check
      _
    $region15: #{tpu_custom_call.1} parent=1 // pred_check_branch
      %52 = sbr.rel (0) target = $region17
    $region16: #{tpu_custom_call.1} parent=1 // pred_region
      %s54 = ssub.s32 1024, 1024
      %55 = vsyncadd [#allocation11], %s54
      %s56 = sshll.u32 [#allocation10], 4
      %s57 = int_to_ptr.vmem [resolvable:$true] %s56
      %62 = dma.hbm_to_vmem [thread:$0]  %s3, 1024, %s57, [#allocation11], 64, 64, 4
    $region17: #{tpu_custom_call.1} parent=1 // pred_fallthru
      _
    // Predicated region
    $region18: #{tpu_custom_call.1} parent=1 // pred_check
      _
    $region19: #{tpu_custom_call.1} parent=1 // pred_check_branch
      %64 = sbr.rel (0) target = $region21
    $region20: #{tpu_custom_call.1} parent=1 // pred_region
      %s66 = ssub.s32 1024, 1024
      %67 = vsyncadd [#allocation11], %s66
      %s68 = sshll.u32 [#allocation12], 4
      %s69 = int_to_ptr.vmem [resolvable:$true] %s68
      %74 = dma.hbm_to_vmem [thread:$0]  %s4, 1024, %s69, [#allocation11], 64, 64, 4
    $region21: #{tpu_custom_call.1} parent=1 // pred_fallthru
      _
    // Predicated region
    $region22: #{tpu_custom_call.1} parent=1 // pred_check
      _
    $region23: #{tpu_custom_call.1} parent=1 // pred_check_branch
      %76 = sbr.rel (0) target = $region25
    $region24: #{tpu_custom_call.1} parent=1 // pred_region
      _
    $region25: #{tpu_custom_call.1} parent=1 // pred_fallthru
      _
    // Predicated region
    $region26: #{tpu_custom_call.1} parent=1 // pred_check
      _
    $region27: #{tpu_custom_call.1} parent=1 // pred_check_branch
      %78 = sbr.rel (0) target = $region29
    $region28: #{tpu_custom_call.1} parent=1 // pred_region
      %79 = dma.done [#allocation5], 512
    $region29: #{tpu_custom_call.1} parent=1 // pred_fallthru
      _
    // Predicated region
    $region30: #{tpu_custom_call.1} parent=1 // pred_check
      _
    $region31: #{tpu_custom_call.1} parent=1 // pred_check_branch
      %81 = sbr.rel (0) target = $region33
    $region32: #{tpu_custom_call.1} parent=1 // pred_region
      %82 = dma.done [#allocation8], 1024
    $region33: #{tpu_custom_call.1} parent=1 // pred_fallthru
      _
    // Predicated region
    $region34: #{tpu_custom_call.1} parent=1 // pred_check
      _
    $region35: #{tpu_custom_call.1} parent=1 // pred_check_branch
      %84 = sbr.rel (0) target = $region37
    $region36: #{tpu_custom_call.1} parent=1 // pred_region
      %85 = dma.done [#allocation8], 1024
    $region37: #{tpu_custom_call.1} parent=1 // pred_fallthru
      _
    // Predicated region
    $region38: #{tpu_custom_call.1} parent=1 // pred_check
      _
    $region39: #{tpu_custom_call.1} parent=1 // pred_check_branch
      %87 = sbr.rel (0) target = $region41
    $region40: #{tpu_custom_call.1} parent=1 // pred_region
      %88 = dma.done [#allocation11], 1024
    $region41: #{tpu_custom_call.1} parent=1 // pred_fallthru
      _
    // Predicated region
    $region42: #{tpu_custom_call.1} parent=1 // pred_check
      _
    $region43: #{tpu_custom_call.1} parent=1 // pred_check_branch
      %90 = sbr.rel (0) target = $region45
    $region44: #{tpu_custom_call.1} parent=1 // pred_region
      %91 = dma.done [#allocation11], 1024
    $region45: #{tpu_custom_call.1} parent=1 // pred_fallthru
      _
    %p93 = scmp.eq.s32.totalorder 0, 0
    // Predicated region
    $region46: #{tpu_custom_call.1} parent=1 // pred_check
      %p94 = pneg %p93
    $region47: #{tpu_custom_call.1} parent=1 // pred_check_branch
      %96 = sbr.rel (%p94) target = $region49
    $region48: #{tpu_custom_call.1} parent=1 // pred_region
      %97 = vst [vmem:[#allocation2] sm:$0xff] 0.0
      %98 = vst [vmem:[#allocation2 + $0x8] sm:$0xff] 0.0
      %99 = vst [vmem:[#allocation2 + $0x10] sm:$0xff] 0.0
      %100 = vst [vmem:[#allocation2 + $0x18] sm:$0xff] 0.0
      %101 = vst [vmem:[#allocation2 + $0x20] sm:$0xff] 0.0
      %102 = vst [vmem:[#allocation2 + $0x28] sm:$0xff] 0.0
      %103 = vst [vmem:[#allocation2 + $0x30] sm:$0xff] 0.0
      %104 = vst [vmem:[#allocation2 + $0x38] sm:$0xff] 0.0
      %105 = vst [vmem:[#allocation2 + $0x40] sm:$0xff] 0.0
      %106 = vst [vmem:[#allocation2 + $0x48] sm:$0xff] 0.0
      %107 = vst [vmem:[#allocation2 + $0x50] sm:$0xff] 0.0
      %108 = vst [vmem:[#allocation2 + $0x58] sm:$0xff] 0.0
      %109 = vst [vmem:[#allocation2 + $0x60] sm:$0xff] 0.0
      %110 = vst [vmem:[#allocation2 + $0x68] sm:$0xff] 0.0
      %111 = vst [vmem:[#allocation2 + $0x70] sm:$0xff] 0.0
      %112 = vst [vmem:[#allocation2 + $0x78] sm:$0xff] 0.0
      %v113 = vld [vmem:[#allocation9] sm:$0xf]
      %v114 = vld [vmem:[#allocation9 + $0x4] sm:$0xf]
      %v115 = vld [vmem:[#allocation9 + $0x8] sm:$0xf]
      %v116 = vld [vmem:[#allocation9 + $0xc] sm:$0xf]
      %v117 = vld [vmem:[#allocation9 + $0x10] sm:$0xf]
      %v118 = vld [vmem:[#allocation9 + $0x14] sm:$0xf]
      %v119 = vld [vmem:[#allocation9 + $0x18] sm:$0xf]
      %v120 = vld [vmem:[#allocation9 + $0x1c] sm:$0xf]
      %v121 = vld [vmem:[#allocation9 + $0x20] sm:$0xf]
      %v122 = vld [vmem:[#allocation9 + $0x24] sm:$0xf]
      %v123 = vld [vmem:[#allocation9 + $0x28] sm:$0xf]
      %v124 = vld [vmem:[#allocation9 + $0x2c] sm:$0xf]
      %v125 = vld [vmem:[#allocation9 + $0x30] sm:$0xf]
      %v126 = vld [vmem:[#allocation9 + $0x34] sm:$0xf]
      %v127 = vld [vmem:[#allocation9 + $0x38] sm:$0xf]
      %v128 = vld [vmem:[#allocation9 + $0x3c] sm:$0xf]
      %v129 = vld [vmem:[#allocation12] sm:$0xf]
      %v130 = vld [vmem:[#allocation12 + $0x4] sm:$0xf]
      %v131 = vld [vmem:[#allocation12 + $0x8] sm:$0xf]
      %v132 = vld [vmem:[#allocation12 + $0xc] sm:$0xf]
      %v133 = vld [vmem:[#allocation12 + $0x10] sm:$0xf]
      %v134 = vld [vmem:[#allocation12 + $0x14] sm:$0xf]
      %v135 = vld [vmem:[#allocation12 + $0x18] sm:$0xf]
      %v136 = vld [vmem:[#allocation12 + $0x1c] sm:$0xf]
      %v137 = vld [vmem:[#allocation12 + $0x20] sm:$0xf]
      %v138 = vld [vmem:[#allocation12 + $0x24] sm:$0xf]
      %v139 = vld [vmem:[#allocation12 + $0x28] sm:$0xf]
      %v140 = vld [vmem:[#allocation12 + $0x2c] sm:$0xf]
      %v141 = vld [vmem:[#allocation12 + $0x30] sm:$0xf]
      %v142 = vld [vmem:[#allocation12 + $0x34] sm:$0xf]
      %v143 = vld [vmem:[#allocation12 + $0x38] sm:$0xf]
      %v144 = vld [vmem:[#allocation12 + $0x3c] sm:$0xf]
      %v161 = vunpack.c.l.b16 %v113
      %v162 = vunpack.c.l.b16 %v114
      %v163 = vunpack.c.l.b16 %v115
      %v164 = vunpack.c.l.b16 %v116
      %v165 = vunpack.c.l.b16 %v117
      %v166 = vunpack.c.l.b16 %v118
      %v167 = vunpack.c.l.b16 %v119
      %v168 = vunpack.c.l.b16 %v120
      %v169 = vunpack.c.l.b16 %v121
      %v170 = vunpack.c.l.b16 %v122
      %v171 = vunpack.c.l.b16 %v123
      %v172 = vunpack.c.l.b16 %v124
      %v173 = vunpack.c.l.b16 %v125
      %v174 = vunpack.c.l.b16 %v126
      %v175 = vunpack.c.l.b16 %v127
      %v176 = vunpack.c.l.b16 %v128
      %v177 = vpack.c.b16 %v162, %v161
      %v178 = vpack.c.b16 %v164, %v163
      %v179 = vpack.c.b16 %v166, %v165
      %v180 = vpack.c.b16 %v168, %v167
      %v181 = vpack.c.b16 %v170, %v169
      %v182 = vpack.c.b16 %v172, %v171
      %v183 = vpack.c.b16 %v174, %v173
      %v184 = vpack.c.b16 %v176, %v175
      %v209 = vunpack.c.l.b16 %v129
      %v210 = vunpack.c.l.b16 %v130
      %v211 = vunpack.c.l.b16 %v131
      %v212 = vunpack.c.l.b16 %v132
      %v213 = vunpack.c.l.b16 %v133
      %v214 = vunpack.c.l.b16 %v134
      %v215 = vunpack.c.l.b16 %v135
      %v216 = vunpack.c.l.b16 %v136
      %v217 = vunpack.c.l.b16 %v137
      %v218 = vunpack.c.l.b16 %v138
      %v219 = vunpack.c.l.b16 %v139
      %v220 = vunpack.c.l.b16 %v140
      %v221 = vunpack.c.l.b16 %v141
      %v222 = vunpack.c.l.b16 %v142
      %v223 = vunpack.c.l.b16 %v143
      %v224 = vunpack.c.l.b16 %v144
      %v225 = vpack.c.b16 %v210, %v209
      %v226 = vpack.c.b16 %v212, %v211
      %v227 = vpack.c.b16 %v214, %v213
      %v228 = vpack.c.b16 %v216, %v215
      %v229 = vpack.c.b16 %v218, %v217
      %v230 = vpack.c.b16 %v220, %v219
      %v231 = vpack.c.b16 %v222, %v221
      %v232 = vpack.c.b16 %v224, %v223
      %241 = vmatprep.subr.bf16.mxu0 0
      %242 = vmatpush1.bf16.msra.mxu0 %v225
      %243 = vmatprep.subr.bf16.mxu0 0
      %244 = vmatpush1.bf16.msra.mxu0 %v226
      %245 = vmatprep.subr.bf16.mxu0 0
      %246 = vmatpush1.bf16.msra.mxu0 %v227
      %247 = vmatprep.subr.bf16.mxu0 0
      %248 = vmatpush1.bf16.msra.mxu0 %v228
      %249 = vmatprep.subr.bf16.mxu0 0
      %250 = vmatpush1.bf16.msra.mxu0 %v229
      %251 = vmatprep.subr.bf16.mxu0 0
      %252 = vmatpush1.bf16.msra.mxu0 %v230
      %253 = vmatprep.subr.bf16.mxu0 0
      %254 = vmatpush1.bf16.msra.mxu0 %v231
      %255 = vmatprep.subr.bf16.mxu0 0
      %256 = vmatpush1.bf16.msra.mxu0 %v232
      %257 = vmatprep.subr.bf16.mxu0 0
      %258 = vmatpush1.bf16.msra.mxu0 0
      %259 = vmatprep.subr.bf16.mxu0 0
      %260 = vmatpush1.bf16.msra.mxu0 0
      %261 = vmatprep.subr.bf16.mxu0 0
      %262 = vmatpush1.bf16.msra.mxu0 0
      %263 = vmatprep.subr.bf16.mxu0 0
      %264 = vmatpush1.bf16.msra.mxu0 0
      %265 = vmatprep.subr.bf16.mxu0 0
      %266 = vmatpush1.bf16.msra.mxu0 0
      %267 = vmatprep.subr.bf16.mxu0 0
      %268 = vmatpush1.bf16.msra.mxu0 0
      %269 = vmatprep.subr.bf16.mxu0 0
      %270 = vmatpush1.bf16.msra.mxu0 0
      %271 = vmatprep.subr.bf16.mxu0 0
      %272 = vmatpush1.bf16.msra.mxu0 0
      %273 = vmatprep.mubr.bf16.mxu0 0
      %274 = vmatmul.mubr.bf16.gmra.mrb[0].mxu0 %v177
      %v275 = vpop.f32.mrb[0].mxu0
      %v276 = vadd.f32 0.0, %v275
      %v277 = vpop.f32.mrb[0].mxu0
      %v278 = vpop.f32.mrb[0].mxu0
      %v279 = vadd.f32 0.0, %v278
      %v280 = vpop.f32.mrb[0].mxu0
      %281 = vmatprep.mubr.bf16.mxu0 0
      %282 = vmatmul.mubr.bf16.gmra.mrb[0].mxu0 %v178
      %v283 = vpop.f32.mrb[0].mxu0
      %v284 = vadd.f32 0.0, %v283
      %v285 = vpop.f32.mrb[0].mxu0
      %v286 = vpop.f32.mrb[0].mxu0
      %v287 = vadd.f32 0.0, %v286
      %v288 = vpop.f32.mrb[0].mxu0
      %289 = vmatprep.mubr.bf16.mxu0 0
      %290 = vmatmul.mubr.bf16.gmra.mrb[0].mxu0 %v179
      %v291 = vpop.f32.mrb[0].mxu0
      %v292 = vadd.f32 0.0, %v291
      %v293 = vpop.f32.mrb[0].mxu0
      %v294 = vpop.f32.mrb[0].mxu0
      %v295 = vadd.f32 0.0, %v294
      %v296 = vpop.f32.mrb[0].mxu0
      %297 = vmatprep.mubr.bf16.mxu0 0
      %298 = vmatmul.mubr.bf16.gmra.mrb[0].mxu0 %v180
      %v299 = vpop.f32.mrb[0].mxu0
      %v300 = vadd.f32 0.0, %v299
      %v301 = vpop.f32.mrb[0].mxu0
      %v302 = vpop.f32.mrb[0].mxu0
      %v303 = vadd.f32 0.0, %v302
      %v304 = vpop.f32.mrb[0].mxu0
      %305 = vmatprep.mubr.bf16.mxu0 0
      %306 = vmatmul.mubr.bf16.gmra.mrb[0].mxu0 %v181
      %v307 = vpop.f32.mrb[0].mxu0
      %v308 = vadd.f32 0.0, %v307
      %v309 = vpop.f32.mrb[0].mxu0
      %v310 = vpop.f32.mrb[0].mxu0
      %v311 = vadd.f32 0.0, %v310
      %v312 = vpop.f32.mrb[0].mxu0
      %313 = vmatprep.mubr.bf16.mxu0 0
      %314 = vmatmul.mubr.bf16.gmra.mrb[0].mxu0 %v182
      %v315 = vpop.f32.mrb[0].mxu0
      %v316 = vadd.f32 0.0, %v315
      %v317 = vpop.f32.mrb[0].mxu0
      %v318 = vpop.f32.mrb[0].mxu0
      %v319 = vadd.f32 0.0, %v318
      %v320 = vpop.f32.mrb[0].mxu0
      %321 = vmatprep.mubr.bf16.mxu0 0
      %322 = vmatmul.mubr.bf16.gmra.mrb[0].mxu0 %v183
      %v323 = vpop.f32.mrb[0].mxu0
      %v324 = vadd.f32 0.0, %v323
      %v325 = vpop.f32.mrb[0].mxu0
      %v326 = vpop.f32.mrb[0].mxu0
      %v327 = vadd.f32 0.0, %v326
      %v328 = vpop.f32.mrb[0].mxu0
      %329 = vmatprep.mubr.bf16.mxu0 0
      %330 = vmatmul.mubr.bf16.gmra.mrb[0].mxu0 %v184
      %v331 = vpop.f32.mrb[0].mxu0
      %v332 = vadd.f32 0.0, %v331
      %v333 = vpop.f32.mrb[0].mxu0
      %v334 = vpop.f32.mrb[0].mxu0
      %v335 = vadd.f32 0.0, %v334
      %v336 = vpop.f32.mrb[0].mxu0
      %337 = vdwg.mxu0
      %338 = vst [vmem:[#allocation3] sm:$0xff] %v276
      %339 = vst [vmem:[#allocation3 + $0x8] sm:$0xff] %v279
      %340 = vst [vmem:[#allocation3 + $0x10] sm:$0xff] %v284
      %341 = vst [vmem:[#allocation3 + $0x18] sm:$0xff] %v287
      %342 = vst [vmem:[#allocation3 + $0x20] sm:$0xff] %v292
      %343 = vst [vmem:[#allocation3 + $0x28] sm:$0xff] %v295
      %344 = vst [vmem:[#allocation3 + $0x30] sm:$0xff] %v300
      %345 = vst [vmem:[#allocation3 + $0x38] sm:$0xff] %v303
      %346 = vst [vmem:[#allocation3 + $0x40] sm:$0xff] %v308
      %347 = vst [vmem:[#allocation3 + $0x48] sm:$0xff] %v311
      %348 = vst [vmem:[#allocation3 + $0x50] sm:$0xff] %v316
      %349 = vst [vmem:[#allocation3 + $0x58] sm:$0xff] %v319
      %350 = vst [vmem:[#allocation3 + $0x60] sm:$0xff] %v324
      %351 = vst [vmem:[#allocation3 + $0x68] sm:$0xff] %v327
      %352 = vst [vmem:[#allocation3 + $0x70] sm:$0xff] %v332
      %353 = vst [vmem:[#allocation3 + $0x78] sm:$0xff] %v335
    $region49: #{tpu_custom_call.1} parent=1 // pred_fallthru
      _
    %v354 = vld [vmem:[#allocation4] sm:$0xff]
    %v355 = vld [vmem:[#allocation4 + $0x8] sm:$0xff]
    %v356 = vld [vmem:[#allocation4 + $0x10] sm:$0xff]
    %v357 = vld [vmem:[#allocation4 + $0x18] sm:$0xff]
    %v358 = vunpack.c.l.s8.bf16 %v354
    %v359 = vunpack.c.h.s8.bf16 %v354
    %v360 = vunpack.c.l.s8.bf16 %v355
    %v361 = vunpack.c.h.s8.bf16 %v355
    %v362 = vunpack.c.l.s8.bf16 %v356
    %v363 = vunpack.c.h.s8.bf16 %v356
    %v364 = vunpack.c.l.s8.bf16 %v357
    %v365 = vunpack.c.h.s8.bf16 %v357
    %v366 = vld [vmem:[#allocation2] sm:$0xff]
    %v367 = vld [vmem:[#allocation2 + $0x8] sm:$0xff]
    %v368 = vld [vmem:[#allocation2 + $0x10] sm:$0xff]
    %v369 = vld [vmem:[#allocation2 + $0x18] sm:$0xff]
    %v370 = vld [vmem:[#allocation2 + $0x20] sm:$0xff]
    %v371 = vld [vmem:[#allocation2 + $0x28] sm:$0xff]
    %v372 = vld [vmem:[#allocation2 + $0x30] sm:$0xff]
    %v373 = vld [vmem:[#allocation2 + $0x38] sm:$0xff]
    %v374 = vld [vmem:[#allocation2 + $0x40] sm:$0xff]
    %v375 = vld [vmem:[#allocation2 + $0x48] sm:$0xff]
    %v376 = vld [vmem:[#allocation2 + $0x50] sm:$0xff]
    %v377 = vld [vmem:[#allocation2 + $0x58] sm:$0xff]
    %v378 = vld [vmem:[#allocation2 + $0x60] sm:$0xff]
    %v379 = vld [vmem:[#allocation2 + $0x68] sm:$0xff]
    %v380 = vld [vmem:[#allocation2 + $0x70] sm:$0xff]
    %v381 = vld [vmem:[#allocation2 + $0x78] sm:$0xff]
    %v382 = vld [vmem:[#allocation7] sm:$0xf]
    %v383 = vld [vmem:[#allocation7 + $0x4] sm:$0xf]
    %v384 = vld [vmem:[#allocation7 + $0x8] sm:$0xf]
    %v385 = vld [vmem:[#allocation7 + $0xc] sm:$0xf]
    %v386 = vld [vmem:[#allocation7 + $0x10] sm:$0xf]
    %v387 = vld [vmem:[#allocation7 + $0x14] sm:$0xf]
    %v388 = vld [vmem:[#allocation7 + $0x18] sm:$0xf]
    %v389 = vld [vmem:[#allocation7 + $0x1c] sm:$0xf]
    %v390 = vld [vmem:[#allocation7 + $0x20] sm:$0xf]
    %v391 = vld [vmem:[#allocation7 + $0x24] sm:$0xf]
    %v392 = vld [vmem:[#allocation7 + $0x28] sm:$0xf]
    %v393 = vld [vmem:[#allocation7 + $0x2c] sm:$0xf]
    %v394 = vld [vmem:[#allocation7 + $0x30] sm:$0xf]
    %v395 = vld [vmem:[#allocation7 + $0x34] sm:$0xf]
    %v396 = vld [vmem:[#allocation7 + $0x38] sm:$0xf]
    %v397 = vld [vmem:[#allocation7 + $0x3c] sm:$0xf]
    %v414 = vunpack.c.l.b16 %v382
    %v415 = vunpack.c.l.b16 %v383
    %v416 = vunpack.c.l.b16 %v384
    %v417 = vunpack.c.l.b16 %v385
    %v418 = vunpack.c.l.b16 %v386
    %v419 = vunpack.c.l.b16 %v387
    %v420 = vunpack.c.l.b16 %v388
    %v421 = vunpack.c.l.b16 %v389
    %v422 = vunpack.c.l.b16 %v390
    %v423 = vunpack.c.l.b16 %v391
    %v424 = vunpack.c.l.b16 %v392
    %v425 = vunpack.c.l.b16 %v393
    %v426 = vunpack.c.l.b16 %v394
    %v427 = vunpack.c.l.b16 %v395
    %v428 = vunpack.c.l.b16 %v396
    %v429 = vunpack.c.l.b16 %v397
    %v430 = vpack.c.b16 %v415, %v414
    %v431 = vpack.c.b16 %v417, %v416
    %v432 = vpack.c.b16 %v419, %v418
    %v433 = vpack.c.b16 %v421, %v420
    %v434 = vpack.c.b16 %v423, %v422
    %v435 = vpack.c.b16 %v425, %v424
    %v436 = vpack.c.b16 %v427, %v426
    %v437 = vpack.c.b16 %v429, %v428
    %446 = vmatprep.subr.bf16.mxu0 0
    %447 = vmatpush1.bf16.msra.mxu0 %v430
    %448 = vmatprep.subr.bf16.mxu0 0
    %449 = vmatpush1.bf16.msra.mxu0 %v431
    %450 = vmatprep.subr.bf16.mxu0 0
    %451 = vmatpush1.bf16.msra.mxu0 %v432
    %452 = vmatprep.subr.bf16.mxu0 0
    %453 = vmatpush1.bf16.msra.mxu0 %v433
    %454 = vmatprep.subr.bf16.mxu0 0
    %455 = vmatpush1.bf16.msra.mxu0 %v434
    %456 = vmatprep.subr.bf16.mxu0 0
    %457 = vmatpush1.bf16.msra.mxu0 %v435
    %458 = vmatprep.subr.bf16.mxu0 0
    %459 = vmatpush1.bf16.msra.mxu0 %v436
    %460 = vmatprep.subr.bf16.mxu0 0
    %461 = vmatpush1.bf16.msra.mxu0 %v437
    %462 = vmatprep.subr.bf16.mxu0 0
    %463 = vmatpush1.bf16.msra.mxu0 0
    %464 = vmatprep.subr.bf16.mxu0 0
    %465 = vmatpush1.bf16.msra.mxu0 0
    %466 = vmatprep.subr.bf16.mxu0 0
    %467 = vmatpush1.bf16.msra.mxu0 0
    %468 = vmatprep.subr.bf16.mxu0 0
    %469 = vmatpush1.bf16.msra.mxu0 0
    %470 = vmatprep.subr.bf16.mxu0 0
    %471 = vmatpush1.bf16.msra.mxu0 0
    %472 = vmatprep.subr.bf16.mxu0 0
    %473 = vmatpush1.bf16.msra.mxu0 0
    %474 = vmatprep.subr.bf16.mxu0 0
    %475 = vmatpush1.bf16.msra.mxu0 0
    %476 = vmatprep.subr.bf16.mxu0 0
    %477 = vmatpush1.bf16.msra.mxu0 0
    %478 = vmatprep.mubr.bf16.mxu0 0
    %479 = vmatmul.mubr.bf16.gmra.mrb[0].mxu0 %v358
    %v480 = vpop.f32.mrb[0].mxu0
    %v481 = vadd.f32 0.0, %v480
    %v482 = vpop.f32.mrb[0].mxu0
    %v483 = vpop.f32.mrb[0].mxu0
    %v484 = vadd.f32 0.0, %v483
    %v485 = vpop.f32.mrb[0].mxu0
    %486 = vmatprep.mubr.bf16.mxu0 0
    %487 = vmatmul.mubr.bf16.gmra.mrb[0].mxu0 %v359
    %v488 = vpop.f32.mrb[0].mxu0
    %v489 = vadd.f32 0.0, %v488
    %v490 = vpop.f32.mrb[0].mxu0
    %v491 = vpop.f32.mrb[0].mxu0
    %v492 = vadd.f32 0.0, %v491
    %v493 = vpop.f32.mrb[0].mxu0
    %494 = vmatprep.mubr.bf16.mxu0 0
    %495 = vmatmul.mubr.bf16.gmra.mrb[0].mxu0 %v360
    %v496 = vpop.f32.mrb[0].mxu0
    %v497 = vadd.f32 0.0, %v496
    %v498 = vpop.f32.mrb[0].mxu0
    %v499 = vpop.f32.mrb[0].mxu0
    %v500 = vadd.f32 0.0, %v499
    %v501 = vpop.f32.mrb[0].mxu0
    %502 = vmatprep.mubr.bf16.mxu0 0
    %503 = vmatmul.mubr.bf16.gmra.mrb[0].mxu0 %v361
    %v504 = vpop.f32.mrb[0].mxu0
    %v505 = vadd.f32 0.0, %v504
    %v506 = vpop.f32.mrb[0].mxu0
    %v507 = vpop.f32.mrb[0].mxu0
    %v508 = vadd.f32 0.0, %v507
    %v509 = vpop.f32.mrb[0].mxu0
    %510 = vmatprep.mubr.bf16.mxu0 0
    %511 = vmatmul.mubr.bf16.gmra.mrb[0].mxu0 %v362
    %v512 = vpop.f32.mrb[0].mxu0
    %v513 = vadd.f32 0.0, %v512
    %v514 = vpop.f32.mrb[0].mxu0
    %v515 = vpop.f32.mrb[0].mxu0
    %v516 = vadd.f32 0.0, %v515
    %v517 = vpop.f32.mrb[0].mxu0
    %518 = vmatprep.mubr.bf16.mxu0 0
    %519 = vmatmul.mubr.bf16.gmra.mrb[0].mxu0 %v363
    %v520 = vpop.f32.mrb[0].mxu0
    %v521 = vadd.f32 0.0, %v520
    %v522 = vpop.f32.mrb[0].mxu0
    %v523 = vpop.f32.mrb[0].mxu0
    %v524 = vadd.f32 0.0, %v523
    %v525 = vpop.f32.mrb[0].mxu0
    %526 = vmatprep.mubr.bf16.mxu0 0
    %527 = vmatmul.mubr.bf16.gmra.mrb[0].mxu0 %v364
    %v528 = vpop.f32.mrb[0].mxu0
    %v529 = vadd.f32 0.0, %v528
    %v530 = vpop.f32.mrb[0].mxu0
    %v531 = vpop.f32.mrb[0].mxu0
    %v532 = vadd.f32 0.0, %v531
    %v533 = vpop.f32.mrb[0].mxu0
    %534 = vmatprep.mubr.bf16.mxu0 0
    %535 = vmatmul.mubr.bf16.gmra.mrb[0].mxu0 %v365
    %v536 = vpop.f32.mrb[0].mxu0
    %v537 = vadd.f32 0.0, %v536
    %v538 = vpop.f32.mrb[0].mxu0
    %v539 = vpop.f32.mrb[0].mxu0
    %v540 = vadd.f32 0.0, %v539
    %v541 = vpop.f32.mrb[0].mxu0
    %542 = vdwg.mxu0
    %v543 = vadd.f32 %v366, %v481
    %v544 = vadd.f32 %v367, %v484
    %v545 = vadd.f32 %v368, %v489
    %v546 = vadd.f32 %v369, %v492
    %v547 = vadd.f32 %v370, %v497
    %v548 = vadd.f32 %v371, %v500
    %v549 = vadd.f32 %v372, %v505
    %v550 = vadd.f32 %v373, %v508
    %v551 = vadd.f32 %v374, %v513
    %v552 = vadd.f32 %v375, %v516
    %v553 = vadd.f32 %v376, %v521
    %v554 = vadd.f32 %v377, %v524
    %v555 = vadd.f32 %v378, %v529
    %v556 = vadd.f32 %v379, %v532
    %v557 = vadd.f32 %v380, %v537
    %v558 = vadd.f32 %v381, %v540
    %559 = vst [vmem:[#allocation2] sm:$0xff] %v543
    %560 = vst [vmem:[#allocation2 + $0x8] sm:$0xff] %v544
    %561 = vst [vmem:[#allocation2 + $0x10] sm:$0xff] %v545
    %562 = vst [vmem:[#allocation2 + $0x18] sm:$0xff] %v546
    %563 = vst [vmem:[#allocation2 + $0x20] sm:$0xff] %v547
    %564 = vst [vmem:[#allocation2 + $0x28] sm:$0xff] %v548
    %565 = vst [vmem:[#allocation2 + $0x30] sm:$0xff] %v549
    %566 = vst [vmem:[#allocation2 + $0x38] sm:$0xff] %v550
    %567 = vst [vmem:[#allocation2 + $0x40] sm:$0xff] %v551
    %568 = vst [vmem:[#allocation2 + $0x48] sm:$0xff] %v552
    %569 = vst [vmem:[#allocation2 + $0x50] sm:$0xff] %v553
    %570 = vst [vmem:[#allocation2 + $0x58] sm:$0xff] %v554
    %571 = vst [vmem:[#allocation2 + $0x60] sm:$0xff] %v555
    %572 = vst [vmem:[#allocation2 + $0x68] sm:$0xff] %v556
    %573 = vst [vmem:[#allocation2 + $0x70] sm:$0xff] %v557
    %574 = vst [vmem:[#allocation2 + $0x78] sm:$0xff] %v558
    // Predicated region
    $region50: #{tpu_custom_call.1} parent=1 // pred_check
      %p575 = pneg %p93
    $region51: #{tpu_custom_call.1} parent=1 // pred_check_branch
      %577 = sbr.rel (%p575) target = $region53
    $region52: #{tpu_custom_call.1} parent=1 // pred_region
      %v578 = vld [vmem:[#allocation2] sm:$0xff]
      %v579 = vld [vmem:[#allocation2 + $0x8] sm:$0xff]
      %v580 = vld [vmem:[#allocation2 + $0x10] sm:$0xff]
      %v581 = vld [vmem:[#allocation2 + $0x18] sm:$0xff]
      %v582 = vld [vmem:[#allocation2 + $0x20] sm:$0xff]
      %v583 = vld [vmem:[#allocation2 + $0x28] sm:$0xff]
      %v584 = vld [vmem:[#allocation2 + $0x30] sm:$0xff]
      %v585 = vld [vmem:[#allocation2 + $0x38] sm:$0xff]
      %v586 = vld [vmem:[#allocation2 + $0x40] sm:$0xff]
      %v587 = vld [vmem:[#allocation2 + $0x48] sm:$0xff]
      %v588 = vld [vmem:[#allocation2 + $0x50] sm:$0xff]
      %v589 = vld [vmem:[#allocation2 + $0x58] sm:$0xff]
      %v590 = vld [vmem:[#allocation2 + $0x60] sm:$0xff]
      %v591 = vld [vmem:[#allocation2 + $0x68] sm:$0xff]
      %v592 = vld [vmem:[#allocation2 + $0x70] sm:$0xff]
      %v593 = vld [vmem:[#allocation2 + $0x78] sm:$0xff]
      %vm594 = vcmp.gt.f32.partialorder %v578, 0.0
      %vm595 = vcmp.gt.f32.partialorder %v579, 0.0
      %vm596 = vcmp.gt.f32.partialorder %v580, 0.0
      %vm597 = vcmp.gt.f32.partialorder %v581, 0.0
      %vm598 = vcmp.gt.f32.partialorder %v582, 0.0
      %vm599 = vcmp.gt.f32.partialorder %v583, 0.0
      %vm600 = vcmp.gt.f32.partialorder %v584, 0.0
      %vm601 = vcmp.gt.f32.partialorder %v585, 0.0
      %vm602 = vcmp.gt.f32.partialorder %v586, 0.0
      %vm603 = vcmp.gt.f32.partialorder %v587, 0.0
      %vm604 = vcmp.gt.f32.partialorder %v588, 0.0
      %vm605 = vcmp.gt.f32.partialorder %v589, 0.0
      %vm606 = vcmp.gt.f32.partialorder %v590, 0.0
      %vm607 = vcmp.gt.f32.partialorder %v591, 0.0
      %vm608 = vcmp.gt.f32.partialorder %v592, 0.0
      %vm609 = vcmp.gt.f32.partialorder %v593, 0.0
      %v610 = vrcp.pop %v578
      %v611 = vrcp.pop %v579
      %v612 = vrcp.pop %v580
      %v613 = vrcp.pop %v581
      %v614 = vrcp.pop %v582
      %v615 = vrcp.pop %v583
      %v616 = vrcp.pop %v584
      %v617 = vrcp.pop %v585
      %v618 = vrcp.pop %v586
      %v619 = vrcp.pop %v587
      %v620 = vrcp.pop %v588
      %v621 = vrcp.pop %v589
      %v622 = vrcp.pop %v590
      %v623 = vrcp.pop %v591
      %v624 = vrcp.pop %v592
      %v625 = vrcp.pop %v593
      %v626 = vsel %vm594, %v610, 0.0
      %v627 = vsel %vm595, %v611, 0.0
      %v628 = vsel %vm596, %v612, 0.0
      %v629 = vsel %vm597, %v613, 0.0
      %v630 = vsel %vm598, %v614, 0.0
      %v631 = vsel %vm599, %v615, 0.0
      %v632 = vsel %vm600, %v616, 0.0
      %v633 = vsel %vm601, %v617, 0.0
      %v634 = vsel %vm602, %v618, 0.0
      %v635 = vsel %vm603, %v619, 0.0
      %v636 = vsel %vm604, %v620, 0.0
      %v637 = vsel %vm605, %v621, 0.0
      %v638 = vsel %vm606, %v622, 0.0
      %v639 = vsel %vm607, %v623, 0.0
      %v640 = vsel %vm608, %v624, 0.0
      %v641 = vsel %vm609, %v625, 0.0
      %643 = vset.pattern.permute.xlu0 8
      %644 = vperm.xlu0 %643, %v626
      %v645 = vpop.permute.xlu0 %644
      %648 = vset.pattern.permute.xlu0 8
      %649 = vperm.xlu0 %648, %v627
      %v650 = vpop.permute.xlu0 %649
      %653 = vset.pattern.permute.xlu0 8
      %654 = vperm.xlu0 %653, %v628
      %v655 = vpop.permute.xlu0 %654
      %658 = vset.pattern.permute.xlu0 8
      %659 = vperm.xlu0 %658, %v629
      %v660 = vpop.permute.xlu0 %659
      %663 = vset.pattern.permute.xlu0 8
      %664 = vperm.xlu0 %663, %v630
      %v665 = vpop.permute.xlu0 %664
      %668 = vset.pattern.permute.xlu0 8
      %669 = vperm.xlu0 %668, %v631
      %v670 = vpop.permute.xlu0 %669
      %673 = vset.pattern.permute.xlu0 8
      %674 = vperm.xlu0 %673, %v632
      %v675 = vpop.permute.xlu0 %674
      %678 = vset.pattern.permute.xlu0 8
      %679 = vperm.xlu0 %678, %v633
      %v680 = vpop.permute.xlu0 %679
      %683 = vset.pattern.permute.xlu0 8
      %684 = vperm.xlu0 %683, %v634
      %v685 = vpop.permute.xlu0 %684
      %688 = vset.pattern.permute.xlu0 8
      %689 = vperm.xlu0 %688, %v635
      %v690 = vpop.permute.xlu0 %689
      %693 = vset.pattern.permute.xlu0 8
      %694 = vperm.xlu0 %693, %v636
      %v695 = vpop.permute.xlu0 %694
      %698 = vset.pattern.permute.xlu0 8
      %699 = vperm.xlu0 %698, %v637
      %v700 = vpop.permute.xlu0 %699
      %703 = vset.pattern.permute.xlu0 8
      %704 = vperm.xlu0 %703, %v638
      %v705 = vpop.permute.xlu0 %704
      %708 = vset.pattern.permute.xlu0 8
      %709 = vperm.xlu0 %708, %v639
      %v710 = vpop.permute.xlu0 %709
      %713 = vset.pattern.permute.xlu0 8
      %714 = vperm.xlu0 %713, %v640
      %v715 = vpop.permute.xlu0 %714
      %718 = vset.pattern.permute.xlu0 8
      %719 = vperm.xlu0 %718, %v641
      %v720 = vpop.permute.xlu0 %719
      %v722 = vmul.f32 %v578, %v645
      %v723 = vmul.f32 %v579, %v650
      %v724 = vmul.f32 %v580, %v655
      %v725 = vmul.f32 %v581, %v660
      %v726 = vmul.f32 %v582, %v665
      %v727 = vmul.f32 %v583, %v670
      %v728 = vmul.f32 %v584, %v675
      %v729 = vmul.f32 %v585, %v680
      %v730 = vmul.f32 %v586, %v685
      %v731 = vmul.f32 %v587, %v690
      %v732 = vmul.f32 %v588, %v695
      %v733 = vmul.f32 %v589, %v700
      %v734 = vmul.f32 %v590, %v705
      %v735 = vmul.f32 %v591, %v710
      %v736 = vmul.f32 %v592, %v715
      %v737 = vmul.f32 %v593, %v720
      %v738 = vpack.c.bf16 %v723, %v722
      %v739 = vpack.c.bf16 %v725, %v724
      %v740 = vpack.c.bf16 %v727, %v726
      %v741 = vpack.c.bf16 %v729, %v728
      %v742 = vpack.c.bf16 %v731, %v730
      %v743 = vpack.c.bf16 %v733, %v732
      %v744 = vpack.c.bf16 %v735, %v734
      %v745 = vpack.c.bf16 %v737, %v736
      %v746 = vld [vmem:[#allocation3] sm:$0xff]
      %v747 = vld [vmem:[#allocation3 + $0x8] sm:$0xff]
      %v748 = vld [vmem:[#allocation3 + $0x10] sm:$0xff]
      %v749 = vld [vmem:[#allocation3 + $0x18] sm:$0xff]
      %v750 = vld [vmem:[#allocation3 + $0x20] sm:$0xff]
      %v751 = vld [vmem:[#allocation3 + $0x28] sm:$0xff]
      %v752 = vld [vmem:[#allocation3 + $0x30] sm:$0xff]
      %v753 = vld [vmem:[#allocation3 + $0x38] sm:$0xff]
      %v754 = vld [vmem:[#allocation3 + $0x40] sm:$0xff]
      %v755 = vld [vmem:[#allocation3 + $0x48] sm:$0xff]
      %v756 = vld [vmem:[#allocation3 + $0x50] sm:$0xff]
      %v757 = vld [vmem:[#allocation3 + $0x58] sm:$0xff]
      %v758 = vld [vmem:[#allocation3 + $0x60] sm:$0xff]
      %v759 = vld [vmem:[#allocation3 + $0x68] sm:$0xff]
      %v760 = vld [vmem:[#allocation3 + $0x70] sm:$0xff]
      %v761 = vld [vmem:[#allocation3 + $0x78] sm:$0xff]
      %v762 = vld [vmem:[#allocation10] sm:$0xf]
      %v763 = vld [vmem:[#allocation10 + $0x4] sm:$0xf]
      %v764 = vld [vmem:[#allocation10 + $0x8] sm:$0xf]
      %v765 = vld [vmem:[#allocation10 + $0xc] sm:$0xf]
      %v766 = vld [vmem:[#allocation10 + $0x10] sm:$0xf]
      %v767 = vld [vmem:[#allocation10 + $0x14] sm:$0xf]
      %v768 = vld [vmem:[#allocation10 + $0x18] sm:$0xf]
      %v769 = vld [vmem:[#allocation10 + $0x1c] sm:$0xf]
      %v770 = vld [vmem:[#allocation10 + $0x20] sm:$0xf]
      %v771 = vld [vmem:[#allocation10 + $0x24] sm:$0xf]
      %v772 = vld [vmem:[#allocation10 + $0x28] sm:$0xf]
      %v773 = vld [vmem:[#allocation10 + $0x2c] sm:$0xf]
      %v774 = vld [vmem:[#allocation10 + $0x30] sm:$0xf]
      %v775 = vld [vmem:[#allocation10 + $0x34] sm:$0xf]
      %v776 = vld [vmem:[#allocation10 + $0x38] sm:$0xf]
      %v777 = vld [vmem:[#allocation10 + $0x3c] sm:$0xf]
      %v794 = vunpack.c.l.b16 %v762
      %v795 = vunpack.c.l.b16 %v763
      %v796 = vunpack.c.l.b16 %v764
      %v797 = vunpack.c.l.b16 %v765
      %v798 = vunpack.c.l.b16 %v766
      %v799 = vunpack.c.l.b16 %v767
      %v800 = vunpack.c.l.b16 %v768
      %v801 = vunpack.c.l.b16 %v769
      %v802 = vunpack.c.l.b16 %v770
      %v803 = vunpack.c.l.b16 %v771
      %v804 = vunpack.c.l.b16 %v772
      %v805 = vunpack.c.l.b16 %v773
      %v806 = vunpack.c.l.b16 %v774
      %v807 = vunpack.c.l.b16 %v775
      %v808 = vunpack.c.l.b16 %v776
      %v809 = vunpack.c.l.b16 %v777
      %v810 = vpack.c.b16 %v795, %v794
      %v811 = vpack.c.b16 %v797, %v796
      %v812 = vpack.c.b16 %v799, %v798
      %v813 = vpack.c.b16 %v801, %v800
      %v814 = vpack.c.b16 %v803, %v802
      %v815 = vpack.c.b16 %v805, %v804
      %v816 = vpack.c.b16 %v807, %v806
      %v817 = vpack.c.b16 %v809, %v808
      %826 = vmatprep.subr.bf16.mxu0 0
      %827 = vmatpush1.bf16.msra.mxu0 %v810
      %828 = vmatprep.subr.bf16.mxu0 0
      %829 = vmatpush1.bf16.msra.mxu0 %v811
      %830 = vmatprep.subr.bf16.mxu0 0
      %831 = vmatpush1.bf16.msra.mxu0 %v812
      %832 = vmatprep.subr.bf16.mxu0 0
      %833 = vmatpush1.bf16.msra.mxu0 %v813
      %834 = vmatprep.subr.bf16.mxu0 0
      %835 = vmatpush1.bf16.msra.mxu0 %v814
      %836 = vmatprep.subr.bf16.mxu0 0
      %837 = vmatpush1.bf16.msra.mxu0 %v815
      %838 = vmatprep.subr.bf16.mxu0 0
      %839 = vmatpush1.bf16.msra.mxu0 %v816
      %840 = vmatprep.subr.bf16.mxu0 0
      %841 = vmatpush1.bf16.msra.mxu0 %v817
      %842 = vmatprep.subr.bf16.mxu0 0
      %843 = vmatpush1.bf16.msra.mxu0 0
      %844 = vmatprep.subr.bf16.mxu0 0
      %845 = vmatpush1.bf16.msra.mxu0 0
      %846 = vmatprep.subr.bf16.mxu0 0
      %847 = vmatpush1.bf16.msra.mxu0 0
      %848 = vmatprep.subr.bf16.mxu0 0
      %849 = vmatpush1.bf16.msra.mxu0 0
      %850 = vmatprep.subr.bf16.mxu0 0
      %851 = vmatpush1.bf16.msra.mxu0 0
      %852 = vmatprep.subr.bf16.mxu0 0
      %853 = vmatpush1.bf16.msra.mxu0 0
      %854 = vmatprep.subr.bf16.mxu0 0
      %855 = vmatpush1.bf16.msra.mxu0 0
      %856 = vmatprep.subr.bf16.mxu0 0
      %857 = vmatpush1.bf16.msra.mxu0 0
      %858 = vmatprep.mubr.bf16.mxu0 0
      %859 = vmatmul.mubr.bf16.gmra.mrb[0].mxu0 %v738
      %v860 = vpop.f32.mrb[0].mxu0
      %v861 = vadd.f32 0.0, %v860
      %v862 = vpop.f32.mrb[0].mxu0
      %v863 = vpop.f32.mrb[0].mxu0
      %v864 = vadd.f32 0.0, %v863
      %v865 = vpop.f32.mrb[0].mxu0
      %866 = vmatprep.mubr.bf16.mxu0 0
      %867 = vmatmul.mubr.bf16.gmra.mrb[0].mxu0 %v739
      %v868 = vpop.f32.mrb[0].mxu0
      %v869 = vadd.f32 0.0, %v868
      %v870 = vpop.f32.mrb[0].mxu0
      %v871 = vpop.f32.mrb[0].mxu0
      %v872 = vadd.f32 0.0, %v871
      %v873 = vpop.f32.mrb[0].mxu0
      %874 = vmatprep.mubr.bf16.mxu0 0
      %875 = vmatmul.mubr.bf16.gmra.mrb[0].mxu0 %v740
      %v876 = vpop.f32.mrb[0].mxu0
      %v877 = vadd.f32 0.0, %v876
      %v878 = vpop.f32.mrb[0].mxu0
      %v879 = vpop.f32.mrb[0].mxu0
      %v880 = vadd.f32 0.0, %v879
      %v881 = vpop.f32.mrb[0].mxu0
      %882 = vmatprep.mubr.bf16.mxu0 0
      %883 = vmatmul.mubr.bf16.gmra.mrb[0].mxu0 %v741
      %v884 = vpop.f32.mrb[0].mxu0
      %v885 = vadd.f32 0.0, %v884
      %v886 = vpop.f32.mrb[0].mxu0
      %v887 = vpop.f32.mrb[0].mxu0
      %v888 = vadd.f32 0.0, %v887
      %v889 = vpop.f32.mrb[0].mxu0
      %890 = vmatprep.mubr.bf16.mxu0 0
      %891 = vmatmul.mubr.bf16.gmra.mrb[0].mxu0 %v742
      %v892 = vpop.f32.mrb[0].mxu0
      %v893 = vadd.f32 0.0, %v892
      %v894 = vpop.f32.mrb[0].mxu0
      %v895 = vpop.f32.mrb[0].mxu0
      %v896 = vadd.f32 0.0, %v895
      %v897 = vpop.f32.mrb[0].mxu0
      %898 = vmatprep.mubr.bf16.mxu0 0
      %899 = vmatmul.mubr.bf16.gmra.mrb[0].mxu0 %v743
      %v900 = vpop.f32.mrb[0].mxu0
      %v901 = vadd.f32 0.0, %v900
      %v902 = vpop.f32.mrb[0].mxu0
      %v903 = vpop.f32.mrb[0].mxu0
      %v904 = vadd.f32 0.0, %v903
      %v905 = vpop.f32.mrb[0].mxu0
      %906 = vmatprep.mubr.bf16.mxu0 0
      %907 = vmatmul.mubr.bf16.gmra.mrb[0].mxu0 %v744
      %v908 = vpop.f32.mrb[0].mxu0
      %v909 = vadd.f32 0.0, %v908
      %v910 = vpop.f32.mrb[0].mxu0
      %v911 = vpop.f32.mrb[0].mxu0
      %v912 = vadd.f32 0.0, %v911
      %v913 = vpop.f32.mrb[0].mxu0
      %914 = vmatprep.mubr.bf16.mxu0 0
      %915 = vmatmul.mubr.bf16.gmra.mrb[0].mxu0 %v745
      %v916 = vpop.f32.mrb[0].mxu0
      %v917 = vadd.f32 0.0, %v916
      %v918 = vpop.f32.mrb[0].mxu0
      %v919 = vpop.f32.mrb[0].mxu0
      %v920 = vadd.f32 0.0, %v919
      %v921 = vpop.f32.mrb[0].mxu0
      %922 = vdwg.mxu0
      %v923 = vadd.f32 %v746, %v861
      %v924 = vadd.f32 %v747, %v864
      %v925 = vadd.f32 %v748, %v869
      %v926 = vadd.f32 %v749, %v872
      %v927 = vadd.f32 %v750, %v877
      %v928 = vadd.f32 %v751, %v880
      %v929 = vadd.f32 %v752, %v885
      %v930 = vadd.f32 %v753, %v888
      %v931 = vadd.f32 %v754, %v893
      %v932 = vadd.f32 %v755, %v896
      %v933 = vadd.f32 %v756, %v901
      %v934 = vadd.f32 %v757, %v904
      %v935 = vadd.f32 %v758, %v909
      %v936 = vadd.f32 %v759, %v912
      %v937 = vadd.f32 %v760, %v917
      %v938 = vadd.f32 %v761, %v920
      %v939 = vld [vmem:[%s5] sm:$0x1]
      %v941 = vlaneseq
      %v942 = vshrl.u32 %v941, 7
      %v943 = vsub.s32 0, %v942
      %v944 = vrot.slane %v939, %v943
      %v946 = vadd.f32 %v923, %v944
      %v947 = vadd.f32 %v924, %v944
      %v948 = vadd.f32 %v925, %v944
      %v949 = vadd.f32 %v926, %v944
      %v950 = vadd.f32 %v927, %v944
      %v951 = vadd.f32 %v928, %v944
      %v952 = vadd.f32 %v929, %v944
      %v953 = vadd.f32 %v930, %v944
      %v954 = vadd.f32 %v931, %v944
      %v955 = vadd.f32 %v932, %v944
      %v956 = vadd.f32 %v933, %v944
      %v957 = vadd.f32 %v934, %v944
      %v958 = vadd.f32 %v935, %v944
      %v959 = vadd.f32 %v936, %v944
      %v960 = vadd.f32 %v937, %v944
      %v961 = vadd.f32 %v938, %v944
      %v962 = vmax.f32 %v946, 0.0
      %v963 = vmax.f32 %v947, 0.0
      %v964 = vmax.f32 %v948, 0.0
      %v965 = vmax.f32 %v949, 0.0
      %v966 = vmax.f32 %v950, 0.0
      %v967 = vmax.f32 %v951, 0.0
      %v968 = vmax.f32 %v952, 0.0
      %v969 = vmax.f32 %v953, 0.0
      %v970 = vmax.f32 %v954, 0.0
      %v971 = vmax.f32 %v955, 0.0
      %v972 = vmax.f32 %v956, 0.0
      %v973 = vmax.f32 %v957, 0.0
      %v974 = vmax.f32 %v958, 0.0
      %v975 = vmax.f32 %v959, 0.0
      %v976 = vmax.f32 %v960, 0.0
      %v977 = vmax.f32 %v961, 0.0
      %v978 = vlaneseq
      %v979 = vand.u32 %v978, 127
      %vm980 = vcmp.eq.s32.totalorder %v979, 32
      %v981 = vsel %vm980, 1.0, %v962
      %v982 = vsel %vm980, 1.0, %v963
      %v983 = vsel %vm980, 1.0, %v964
      %v984 = vsel %vm980, 1.0, %v965
      %v985 = vsel %vm980, 1.0, %v966
      %v986 = vsel %vm980, 1.0, %v967
      %v987 = vsel %vm980, 1.0, %v968
      %v988 = vsel %vm980, 1.0, %v969
      %v989 = vsel %vm980, 1.0, %v970
      %v990 = vsel %vm980, 1.0, %v971
      %v991 = vsel %vm980, 1.0, %v972
      %v992 = vsel %vm980, 1.0, %v973
      %v993 = vsel %vm980, 1.0, %v974
      %v994 = vsel %vm980, 1.0, %v975
      %v995 = vsel %vm980, 1.0, %v976
      %v996 = vsel %vm980, 1.0, %v977
      %v997 = vpack.c.bf16 %v982, %v981
      %v998 = vpack.c.bf16 %v984, %v983
      %v999 = vpack.c.bf16 %v986, %v985
      %v1000 = vpack.c.bf16 %v988, %v987
      %v1001 = vpack.c.bf16 %v990, %v989
      %v1002 = vpack.c.bf16 %v992, %v991
      %v1003 = vpack.c.bf16 %v994, %v993
      %v1004 = vpack.c.bf16 %v996, %v995
      %v1013 = vunpack.c.l.b16 %v997
      %v1014 = vunpack.c.h.b16 %v997
      %v1015 = vunpack.c.l.b16 %v998
      %v1016 = vunpack.c.h.b16 %v998
      %v1017 = vunpack.c.l.b16 %v999
      %v1018 = vunpack.c.h.b16 %v999
      %v1019 = vunpack.c.l.b16 %v1000
      %v1020 = vunpack.c.h.b16 %v1000
      %v1021 = vunpack.c.l.b16 %v1001
      %v1022 = vunpack.c.h.b16 %v1001
      %v1023 = vunpack.c.l.b16 %v1002
      %v1024 = vunpack.c.h.b16 %v1002
      %v1025 = vunpack.c.l.b16 %v1003
      %v1026 = vunpack.c.h.b16 %v1003
      %v1027 = vunpack.c.l.b16 %v1004
      %v1028 = vunpack.c.h.b16 %v1004
      %v1029 = vpack.c.b16 %v1013, %v1013
      %v1030 = vpack.c.b16 %v1014, %v1014
      %v1031 = vpack.c.b16 %v1015, %v1015
      %v1032 = vpack.c.b16 %v1016, %v1016
      %v1033 = vpack.c.b16 %v1017, %v1017
      %v1034 = vpack.c.b16 %v1018, %v1018
      %v1035 = vpack.c.b16 %v1019, %v1019
      %v1036 = vpack.c.b16 %v1020, %v1020
      %v1037 = vpack.c.b16 %v1021, %v1021
      %v1038 = vpack.c.b16 %v1022, %v1022
      %v1039 = vpack.c.b16 %v1023, %v1023
      %v1040 = vpack.c.b16 %v1024, %v1024
      %v1041 = vpack.c.b16 %v1025, %v1025
      %v1042 = vpack.c.b16 %v1026, %v1026
      %v1043 = vpack.c.b16 %v1027, %v1027
      %v1044 = vpack.c.b16 %v1028, %v1028
      %1061 = vst [vmem:[#allocation13] sm:$0xf] %v1029
      %1062 = vst [vmem:[#allocation13 + $0x4] sm:$0xf] %v1030
      %1063 = vst [vmem:[#allocation13 + $0x8] sm:$0xf] %v1031
      %1064 = vst [vmem:[#allocation13 + $0xc] sm:$0xf] %v1032
      %1065 = vst [vmem:[#allocation13 + $0x10] sm:$0xf] %v1033
      %1066 = vst [vmem:[#allocation13 + $0x14] sm:$0xf] %v1034
      %1067 = vst [vmem:[#allocation13 + $0x18] sm:$0xf] %v1035
      %1068 = vst [vmem:[#allocation13 + $0x1c] sm:$0xf] %v1036
      %1069 = vst [vmem:[#allocation13 + $0x20] sm:$0xf] %v1037
      %1070 = vst [vmem:[#allocation13 + $0x24] sm:$0xf] %v1038
      %1071 = vst [vmem:[#allocation13 + $0x28] sm:$0xf] %v1039
      %1072 = vst [vmem:[#allocation13 + $0x2c] sm:$0xf] %v1040
      %1073 = vst [vmem:[#allocation13 + $0x30] sm:$0xf] %v1041
      %1074 = vst [vmem:[#allocation13 + $0x34] sm:$0xf] %v1042
      %1075 = vst [vmem:[#allocation13 + $0x38] sm:$0xf] %v1043
      %1076 = vst [vmem:[#allocation13 + $0x3c] sm:$0xf] %v1044
    $region53: #{tpu_custom_call.1} parent=1 // pred_fallthru
      _
    // Predicated region
    $region54: #{tpu_custom_call.1} parent=1 // pred_check
      _
    $region55: #{tpu_custom_call.1} parent=1 // pred_check_branch
      %1078 = sbr.rel (0) target = $region57
    $region56: #{tpu_custom_call.1} parent=1 // pred_region
      %s1080 = ssub.s32 1024, 1024
      %1081 = vsyncadd [#allocation6], %s1080
      %s1082 = sshll.u32 [#allocation13], 4
      %s1083 = int_to_ptr.vmem [resolvable:$true] %s1082
      %1088 = dma.vmem_to_hbm [thread:$0]  %s1083, 1024, %s6, [#allocation6], 64, 64, 4
    $region57: #{tpu_custom_call.1} parent=1 // pred_fallthru
      _
    // Predicated region
    $region58: #{tpu_custom_call.1} parent=1 // pred_check
      _
    $region59: #{tpu_custom_call.1} parent=1 // pred_check_branch
      %1090 = sbr.rel (0) target = $region61
    $region60: #{tpu_custom_call.1} parent=1 // pred_region
      %1091 = dma.done [#allocation6], 1024
    $region61: #{tpu_custom_call.1} parent=1 // pred_fallthru
      _
    %1092 = vsyncpa [#allocation5], 1
    %1093 = vsyncpa [#allocation8], 1
    %1094 = vsyncpa [#allocation11], 1
    %1095 = vsyncpa [#allocation6], 1

</llo_original>
